<compile_context>
chip_gen: v5e
topology: v5e:2x2
jax: 0.10.0
libtpu: 0.0.40
codegen_flags: <defaults>
</compile_context>

<pallas_src>
import functools

import jax
import jax.numpy as jnp
from jax.experimental import pallas as pl
from jax.experimental.pallas import tpu as pltpu

LANE = 128
_TARGET_IN_BYTES = 2 << 20      # ~2 MiB (lane-padded) per input block buffer
_MAX_LANE_CHUNKS = 16           # cap block width at 16*128 = 2048 lanes
_MAX_ROW_TILE = 8192            # cap row tile so scratch/output stay modest


def _round_up(x, m):
    return ((x + m - 1) // m) * m


def _round_down(x, m):
    return (x // m) * m


def _cdiv(a, b):
    return -(-a // b)


# --------------------------------------------------------------------------
# Kernel: rows of a (nc, hw) matrix are streamed in (tr, thw) blocks.
# Grid = (row blocks [parallel], hw blocks [arbitrary / accumulated]).
# --------------------------------------------------------------------------
def _gap_kernel(x_ref, o_ref, acc_ref, *, hw, thw, inv_hw):
    k = pl.program_id(1)

    @pl.when(k == 0)
    def _init():
        acc_ref[...] = jnp.zeros_like(acc_ref)

    x = x_ref[...].astype(jnp.float32)                      # (tr, thw)

    # Tail masking: the last hw block may extend past hw; zero padded columns.
    if hw % thw != 0:
        col = k * thw + jax.lax.broadcasted_iota(jnp.int32, x.shape, 1)
        x = jnp.where(col < hw, x, 0.0)

    # Lane-dense accumulation: fold 128-lane chunks together on the VPU; the
    # single cross-lane (XLU) reduce happens only once, in the finalize step.
    n_chunks = thw // LANE
    if thw % LANE == 0 and n_chunks > 1:
        part = x[:, 0:LANE]
        for j in range(1, n_chunks):
            part = part + x[:, j * LANE:(j + 1) * LANE]
        acc_ref[...] += part
    else:
        acc_ref[...] += x

    @pl.when(k == pl.num_programs(1) - 1)
    def _finalize():
        row_sum = jnp.sum(acc_ref[...], axis=1, keepdims=True)   # (tr, 1)
        o_ref[...] = (row_sum * inv_hw).astype(o_ref.dtype)


# --------------------------------------------------------------------------
# Byte-targeted, dtype-aware tile selection (never exceeds array extents).
# --------------------------------------------------------------------------
def _choose_tiles(nc, hw, itemsize):
    sub = max(8, 32 // itemsize)          # sublane step: f32=8, bf16=16, int8=32

    # Lane (hw) tile: full extent when hw <= 128, else a multiple of 128 <= hw,
    # capped at 2048 lanes.  The partial tail block is masked in-kernel.
    if hw <= LANE:
        thw = hw
    else:
        thw = LANE * min(hw // LANE, _MAX_LANE_CHUNKS)

    # Row (nc) tile: target ~2 MiB of lane-padded input per block buffer.
    if nc <= sub:
        tr = nc
    else:
        row_bytes = _round_up(max(thw, LANE), LANE) * itemsize
        tr = max(sub, _round_down(_TARGET_IN_BYTES // row_bytes, sub))
        tr = min(tr, _MAX_ROW_TILE, _round_down(nc, sub))
        # Megacore: ensure >= 2 blocks on the "parallel" row axis so both v7x
        # TensorCores get work whenever nc allows it.
        if _cdiv(nc, tr) < 2:
            tr = max(sub, _round_up(_cdiv(nc, 2), sub))
    return tr, thw


# --------------------------------------------------------------------------
# Wrapper: NCHW -> (N, C, 1, 1), identical semantics to AdaptiveAvgPool2d((1,1))
# --------------------------------------------------------------------------
def global_avg_pool_2d(x):
    N, C, H, W = x.shape
    nc, hw = N * C, H * W
    itemsize = jnp.dtype(x.dtype).itemsize

    x2 = x.reshape(nc, hw)                # free view of contiguous NCHW memory

    tr, thw = _choose_tiles(nc, hw, itemsize)
    grid = (pl.cdiv(nc, tr), pl.cdiv(hw, thw))
    acc_lanes = LANE if thw >= LANE else thw

    out = pl.pallas_call(
        functools.partial(_gap_kernel, hw=hw, thw=thw, inv_hw=1.0 / hw),
        out_shape=jax.ShapeDtypeStruct((nc, 1), x.dtype),
        grid=grid,
        in_specs=[pl.BlockSpec((tr, thw), lambda i, k: (i, k))],
        out_specs=pl.BlockSpec((tr, 1), lambda i, k: (i, 0)),
        scratch_shapes=[pltpu.VMEM((tr, acc_lanes), jnp.float32)],
        compiler_params=pltpu.CompilerParams(
            dimension_semantics=("parallel", "arbitrary"),
            vmem_limit_bytes=32 * 1024 * 1024),
        cost_estimate=pl.CostEstimate(
            flops=nc * hw,
            transcendentals=0,
            bytes_accessed=nc * hw * itemsize + nc * itemsize),
    )(x2)
    return out.reshape(N, C, 1, 1)


def _reference(x):
    return x.astype(jnp.float32).mean(axis=(2, 3), keepdims=True).astype(x.dtype)


# --------------------------------------------------------------------------
if __name__ == "__main__":
    key = jax.random.PRNGKey(0)

    # Primary small example consistent with the module.
    x = jax.random.normal(key, (2, 4, 16, 16), jnp.float32)
    y = jax.block_until_ready(global_avg_pool_2d(x))
    assert y.shape == (2, 4, 1, 1) and y.dtype == x.dtype
    assert jnp.allclose(y, _reference(x), rtol=1e-5, atol=1e-5)

    # Multi-row-block path (megacore split) with small hw.
    x2 = jax.random.normal(jax.random.fold_in(key, 1), (4, 512, 8, 8), jnp.float32)
    y2 = jax.block_until_ready(global_avg_pool_2d(x2))
    assert jnp.allclose(y2, _reference(x2), rtol=1e-5, atol=1e-5)

    # Non-divisible hw: exercises the cdiv grid + in-kernel tail masking.
    x3 = jax.random.normal(jax.random.fold_in(key, 2), (2, 96, 30, 30), jnp.float32)
    y3 = jax.block_until_ready(global_avg_pool_2d(x3))
    assert jnp.allclose(y3, _reference(x3), rtol=1e-5, atol=1e-5)

    # bf16 path (sublane-16 row tile, f32 accumulation, hw < 128).
    x4 = jax.random.normal(jax.random.fold_in(key, 3), (2, 64, 7, 7), jnp.bfloat16)
    y4 = jax.block_until_ready(global_avg_pool_2d(x4))
    assert jnp.allclose(y4.astype(jnp.float32), _reference(x4).astype(jnp.float32),
                        rtol=2e-2, atol=2e-2)

    print("KERNEL_OK")
</pallas_src>

<mosaic_0001>
module attributes {stable_mosaic.version = 11 : i64} {
  func.func @_gap_kernel(%arg0: i32, %arg1: i32, %arg2: memref<8x256xf32, #tpu.memory_space<vmem>>, %arg3: memref<8x1xf32, #tpu.memory_space<vmem>>, %arg4: memref<8x128xf32, #tpu.memory_space<vmem>>) attributes {dimension_semantics = [#tpu.dimension_semantics<parallel>, #tpu.dimension_semantics<arbitrary>], iteration_bounds = array<i64: 1, 1>, scalar_prefetch = 0 : i64, scratch_operands = 1 : i64, tpu.core_type = #tpu.core_type<tc>, window_params = [{transform_indices = @transform_0, window_bounds = array<i64: 8, 256>}, {transform_indices = @transform_1, window_bounds = array<i64: 8, 1>}]} {
    %c0_i32 = arith.constant 0 : i32
    %0 = arith.cmpi eq, %arg1, %c0_i32 : i32
    %1 = arith.extui %0 : i1 to i32
    %c0_i32_0 = arith.constant 0 : i32
    %2 = arith.cmpi ne, %1, %c0_i32_0 : i32
    scf.if %2 {
      %cst = arith.constant 0.000000e+00 : f32
      %13 = vector.broadcast %cst : f32 to vector<8x128xf32>
      %c0_8 = arith.constant 0 : index
      %c0_9 = arith.constant 0 : index
      %14 = vector.load %arg4[%c0_8, %c0_9] : memref<8x128xf32, #tpu.memory_space<vmem>>, vector<8x128xf32>
      tpu.vector_store %arg4[%c0_8, %c0_9], %13 {strides = array<i32>} : memref<8x128xf32, #tpu.memory_space<vmem>>, vector<8x128xf32>,
    } else {
    }
    %c0 = arith.constant 0 : index
    %c0_1 = arith.constant 0 : index
    %3 = vector.load %arg2[%c0, %c0_1] : memref<8x256xf32, #tpu.memory_space<vmem>>, vector<8x256xf32>
    %4 = vector.extract_strided_slice %3 {offsets = [0, 0], sizes = [8, 128], strides = [1, 1]} : vector<8x256xf32> to vector<8x128xf32>
    %5 = vector.extract_strided_slice %3 {offsets = [0, 128], sizes = [8, 128], strides = [1, 1]} : vector<8x256xf32> to vector<8x128xf32>
    %6 = arith.addf %4, %5 : vector<8x128xf32>
    %c0_2 = arith.constant 0 : index
    %c0_3 = arith.constant 0 : index
    %7 = vector.load %arg4[%c0_2, %c0_3] : memref<8x128xf32, #tpu.memory_space<vmem>>, vector<8x128xf32>
    %8 = arith.addf %7, %6 : vector<8x128xf32>
    %c0_4 = arith.constant 0 : index
    %c0_5 = arith.constant 0 : index
    %9 = vector.load %arg4[%c0_4, %c0_5] : memref<8x128xf32, #tpu.memory_space<vmem>>, vector<8x128xf32>
    tpu.vector_store %arg4[%c0_4, %c0_5], %8 {strides = array<i32>} : memref<8x128xf32, #tpu.memory_space<vmem>>, vector<8x128xf32>,
    %c0_i32_6 = arith.constant 0 : i32
    %10 = arith.cmpi eq, %arg1, %c0_i32_6 : i32
    %11 = arith.extui %10 : i1 to i32
    %c0_i32_7 = arith.constant 0 : i32
    %12 = arith.cmpi ne, %11, %c0_i32_7 : i32
    scf.if %12 {
      %c0_8 = arith.constant 0 : index
      %c0_9 = arith.constant 0 : index
      %13 = vector.load %arg4[%c0_8, %c0_9] : memref<8x128xf32, #tpu.memory_space<vmem>>, vector<8x128xf32>
      %cst = arith.constant dense<0.000000e+00> : vector<8xf32>
      %14 = vector.multi_reduction <add>, %13, %cst [1] : vector<8x128xf32> to vector<8xf32>
      %15 = vector.shape_cast %14 : vector<8xf32> to vector<8x1xf32>
      %cst_10 = arith.constant 3.906250e-03 : f32
      %16 = vector.broadcast %cst_10 : f32 to vector<8x1xf32>
      %17 = arith.mulf %15, %16 : vector<8x1xf32>
      %c0_11 = arith.constant 0 : index
      %c0_12 = arith.constant 0 : index
      %18 = vector.load %arg3[%c0_11, %c0_12] : memref<8x1xf32, #tpu.memory_space<vmem>>, vector<8x1xf32>
      tpu.vector_store %arg3[%c0_11, %c0_12], %17 {strides = array<i32>} : memref<8x1xf32, #tpu.memory_space<vmem>>, vector<8x1xf32>,
    } else {
    }
    return
  }
  func.func @transform_0(%arg0: i32, %arg1: i32) -> (i32, i32) {
    %c0_i32 = arith.constant 0 : i32
    return %arg0, %arg1 : i32, i32
  }
  func.func @transform_1(%arg0: i32, %arg1: i32) -> (i32, i32) {
    %c0_i32 = arith.constant 0 : i32
    %c0_i32_0 = arith.constant 0 : i32
    return %arg0, %c0_i32 : i32, i32
  }
}

</mosaic_0001>

<llo_original>
// kernel: tpu_custom_call.1
$region0: #{tpu_custom_call.1}
  #allocation0 [shape = 'u32[]', space=smem, size = 0x4, offset = 0x4, fixed_abs, tag = 'smem constant byte address 0x4 - core index']
  #allocation1 [shape = 'u32[72,128]{1,0:T(1,128)}', space=vmem, size = 0x9000, scoped, tag = 'internal scratch']
  #allocation2 [shape = 'f32[8,128]{1,0:T(8,128)}', space=vmem, size = 0x1000, scoped, tag = 'scratch operand']
  %s0 = inlined_call_operand.hbm [shape: f32[8,256], index: 0, kind: input, shape index: {}]
  %s1 = inlined_call_operand.vmem [shape: f32[8,1], index: 1, kind: output, shape index: {}]
  %s2 = sld [smem:[#allocation0]]
  $region26: #{tpu_custom_call.1} parent=0
    _
  %s4 = ssub.s32 1, %s2
  %s5 = scalar_select 0, %s4, %s2
  $region1: #{tpu_custom_call.1} parent=0
    #allocation3 [shape = 'u8[8192]{0}', space=vmem, size = 0x2000, scoped, tag = 'input window, operand 0, single buffered']
    #allocation4 [shape = 's32[1]{0}', space=sflag, size = 0x4, scoped, tag = 'scoped memory for tpu_custom_call.1']
    %6 = vsyncpa [#allocation4], 0
    // Predicated region
    $region2: #{tpu_custom_call.1} parent=1 // pred_check
      _
    $region3: #{tpu_custom_call.1} parent=1 // pred_check_branch
      %8 = sbr.rel (0) target = $region5
    $region4: #{tpu_custom_call.1} parent=1 // pred_region
      %10 = vsyncadd [#allocation4], 0
      %s12 = sshll.u32 %s0, 4
      %s13 = int_to_ptr.hbm [resolvable:$true] %s12
      %s14 = sshll.u32 [#allocation3], 4
      %s15 = int_to_ptr.vmem [resolvable:$true] %s14
      %17 = dma.hbm_to_vmem [thread:$0]  %s13, 256, %s15, [#allocation4]
    $region5: #{tpu_custom_call.1} parent=1 // pred_fallthru
      _
    // Predicated region
    $region6: #{tpu_custom_call.1} parent=1 // pred_check
      _
    $region7: #{tpu_custom_call.1} parent=1 // pred_check_branch
      %19 = sbr.rel (0) target = $region9
    $region8: #{tpu_custom_call.1} parent=1 // pred_region
      %21 = dma.done [#allocation4], 256
    $region9: #{tpu_custom_call.1} parent=1 // pred_fallthru
      _
    %p22 = scmp.eq.s32.totalorder 0, 0
    // Predicated region
    $region10: #{tpu_custom_call.1} parent=1 // pred_check
      %p23 = pneg %p22
    $region11: #{tpu_custom_call.1} parent=1 // pred_check_branch
      %25 = sbr.rel (%p23) target = $region13
    $region12: #{tpu_custom_call.1} parent=1 // pred_region
      %26 = vst [vmem:[#allocation2] sm:$0xff] 0.0
    $region13: #{tpu_custom_call.1} parent=1 // pred_fallthru
      _
    %v27 = vld [vmem:[#allocation3] sm:$0xff]
    %v28 = vld [vmem:[#allocation3 + $0x8] sm:$0xff]
    %v29 = vadd.f32 %v27, %v28
    %v30 = vld [vmem:[#allocation2] sm:$0xff]
    %v31 = vadd.f32 %v30, %v29
    %32 = vst [vmem:[#allocation2] sm:$0xff] %v31
    // Predicated region
    $region14: #{tpu_custom_call.1} parent=1 // pred_check
      %p33 = pneg %p22
    $region15: #{tpu_custom_call.1} parent=1 // pred_check_branch
      %35 = sbr.rel (%p33) target = $region17
    $region16: #{tpu_custom_call.1} parent=1 // pred_region
      %v36 = vld [vmem:[#allocation2] sm:$0xff]
      %37 = vadd.xlane.f32.xlu0 %v36
      %v38 = vpop.xlane.xlu0 %37
      %v39 = vmul.f32 %v38, 0.00390625
      %vm40 = vcmask 7168
      %41 = vst.msk [vmem:[%s1] sm:$0xff] %vm40, %v39
    $region17: #{tpu_custom_call.1} parent=1 // pred_fallthru
      _
    // Predicated region
    $region18: #{tpu_custom_call.1} parent=1 // pred_check
      _
    $region19: #{tpu_custom_call.1} parent=1 // pred_check_branch
      %43 = sbr.rel (0) target = $region21
    $region20: #{tpu_custom_call.1} parent=1 // pred_region
      _
    $region21: #{tpu_custom_call.1} parent=1 // pred_fallthru
      _
    // Predicated region
    $region22: #{tpu_custom_call.1} parent=1 // pred_check
      _
    $region23: #{tpu_custom_call.1} parent=1 // pred_check_branch
      %45 = sbr.rel (0) target = $region25
    $region24: #{tpu_custom_call.1} parent=1 // pred_region
      _
    $region25: #{tpu_custom_call.1} parent=1 // pred_fallthru
      _
    %46 = vsyncpa [#allocation4], 1

</llo_original>
